<compile_context>
chip_gen: v7x
topology: tpu7x:2x2x1
jax: 0.10.0
libtpu: 0.0.40
codegen_flags: <defaults>
</compile_context>

<pallas_src>
import functools

import jax
import jax.numpy as jnp
from jax import lax
from jax.experimental import pallas as pl
from jax.experimental.pallas import tpu as pltpu


def _round_up(x, m):
    return ((x + m - 1) // m) * m


# ----------------------------- Pallas kernel ---------------------------------
def convnet_pool_kernel(patches_ref, wconv_ref, bconv_ref, out_ref, acc_ref,
                        *, hw, row_tile, n_rt_per_split, apply_mask):
    # patches_ref: (1, row_tile, K)  bf16  im2col rows of the current sample
    # wconv_ref:   (K, Coutp)        bf16  resident conv weight matrix
    # bconv_ref:   (1, Coutp)        f32   resident conv bias
    # out_ref:     (1, 1, 1, Coutp)  f32   pooled channel sums for (sample, split)
    # acc_ref:     (1, Coutp)        f32   running pooled-sum accumulator
    r = pl.program_id(2)

    @pl.when(r == 0)
    def _init():
        acc_ref[...] = jnp.zeros_like(acc_ref)

    # Convolution as one MXU GEMM (bf16 operands, f32 accumulate) + bias + ReLU.
    conv = jnp.dot(patches_ref[0], wconv_ref[...],
                   preferred_element_type=jnp.float32)            # (row_tile, Coutp)
    conv = jnp.maximum(conv + bconv_ref[...], 0.0)

    if apply_mask:
        # Ragged last tile: zero out padded rows so relu(b_conv) does not leak
        # into the pooled mean.
        s = pl.program_id(1)
        row0 = (s * n_rt_per_split + r) * row_tile
        gidx = row0 + lax.broadcasted_iota(jnp.int32, (row_tile, 1), 0)
        conv = jnp.where(gidx < hw, conv, 0.0)

    # Global spatial mean numerator: cross-sublane reduce (XLU slot, not MXU).
    acc_ref[...] += jnp.sum(conv, axis=0, keepdims=True)

    # Dropout(p=0.0) -> identity at inference time.

    @pl.when(r == pl.num_programs(2) - 1)
    def _finalize():
        out_ref[...] = acc_ref[...][None, None]


# ------------------------------ Wrapper ---------------------------------------
def convnet_forward(x_nchw, params, *, row_tile_cap=2048, lane=128):
    """x_nchw: (N, Cin, H, W) float32 — same layout as the PyTorch module."""
    w_conv = params["w_conv"]      # (Cout, Cin, KH, KW)   torch Conv2d layout
    b_conv = params["b_conv"]      # (Cout,)
    w_fc = params["w_fc"]          # (classes, Cout)       torch Linear layout
    b_fc = params["b_fc"]          # (classes,)

    N, Cin, H, W = x_nchw.shape
    Cout, _, KH, KW = w_conv.shape
    classes = w_fc.shape[0]
    HW = H * W
    K = Cin * KH * KW
    Coutp = _round_up(Cout, lane)

    # im2col as one fused XLA op: NHWC output, cin-major/(kh,kw) feature order,
    # i.e. identical to torch weight.reshape(Cout, -1).  The contraction dim is
    # kept at K (=36): no lane padding, no extra pad pass over the big tensor.
    patches = lax.conv_general_dilated_patches(
        x_nchw.astype(jnp.bfloat16),
        filter_shape=(KH, KW),
        window_strides=(1, 1),
        padding=((KH // 2, KH // 2), (KW // 2, KW // 2)),        # torch padding=1
        dimension_numbers=("NCHW", "OIHW", "NHWC"),
    ).reshape(N, HW, K)                                          # (N, HW, 36) bf16

    # Row tiling: largest multiple-of-8 tile up to the cap; ragged last tile is
    # zero-padded here and masked in the kernel.
    row_tile = min(_round_up(HW, 8), _round_up(row_tile_cap, 8))
    HWp = _round_up(HW, row_tile)
    if HWp != HW:
        patches = jnp.pad(patches, ((0, 0), (0, HWp - HW), (0, 0)))
    n_rt = HWp // row_tile

    # v7x has 2 TensorCores but only "parallel" grid axes shard across them; at
    # batch < 2 split the row tiles across a second parallel axis instead.
    n_splits = 2 if (N < 2 and n_rt >= 2 and n_rt % 2 == 0) else 1
    n_rt_per_split = n_rt // n_splits

    # Small resident operands, zero-padded to a lane-dense channel dim.
    w_mat = jnp.pad(w_conv.reshape(Cout, K).T.astype(jnp.bfloat16),
                    ((0, 0), (0, Coutp - Cout)))                 # (K, Coutp)
    b_conv2d = jnp.pad(b_conv.astype(jnp.float32),
                       (0, Coutp - Cout)).reshape(1, Coutp)      # (1, Coutp)

    # VMEM budget: every spec is double-buffered; last dims round up to 128
    # lanes in VMEM layout.  Capped at 32 MiB (v7x physical VMEM is 64 MiB).
    vmem_bytes = (2 * row_tile * lane * 2                        # patches tile
                  + 2 * _round_up(K, 16) * Coutp * 2             # conv weight
                  + 2 * 8 * Coutp * 4                            # conv bias
                  + 2 * 8 * Coutp * 4                            # out tile
                  + 8 * Coutp * 4)                               # accumulator
    vmem_limit = int(min(32 * 2**20, max(8 * 2**20, 8 * vmem_bytes)))

    kernel = functools.partial(
        convnet_pool_kernel, hw=HW, row_tile=row_tile,
        n_rt_per_split=n_rt_per_split, apply_mask=(HWp != HW))

    sums = pl.pallas_call(
        kernel,
        out_shape=jax.ShapeDtypeStruct((N, n_splits, 1, Coutp), jnp.float32),
        grid_spec=pltpu.PrefetchScalarGridSpec(
            num_scalar_prefetch=0,
            grid=(N, n_splits, n_rt_per_split),
            in_specs=[
                pl.BlockSpec((1, row_tile, K),
                             lambda n, s, r: (n, s * n_rt_per_split + r, 0)),
                pl.BlockSpec((K, Coutp), lambda n, s, r: (0, 0)),   # resident
                pl.BlockSpec((1, Coutp), lambda n, s, r: (0, 0)),   # resident
            ],
            out_specs=pl.BlockSpec((1, 1, 1, Coutp),
                                   lambda n, s, r: (n, s, 0, 0)),
            scratch_shapes=[pltpu.VMEM((1, Coutp), jnp.float32)],
        ),
        compiler_params=pltpu.CompilerParams(
            dimension_semantics=("parallel", "parallel", "arbitrary"),
            vmem_limit_bytes=vmem_limit,
        ),
    )(patches, w_mat, b_conv2d)

    # Mean over H*W, then the classifier as one f32 batched GEMM (better MXU
    # shape than a per-sample (1,128)x(128,128) matmul in the kernel finalize,
    # and keeps pooled in f32 end-to-end).
    pooled = sums.reshape(N, n_splits, Coutp).sum(axis=1)[:, :Cout] / float(HW)
    logits = jnp.dot(pooled, w_fc.T.astype(jnp.float32),
                     precision=jax.lax.Precision.HIGHEST) + b_fc.astype(jnp.float32)
    # Dropout(p=0.0) identity; squeeze() is a no-op for (N, classes).
    return logits


# ----------------------------- Reference (pure JAX) ---------------------------
def convnet_reference(x_nchw, params):
    conv = lax.conv_general_dilated(
        x_nchw, params["w_conv"], window_strides=(1, 1), padding="SAME",
        dimension_numbers=("NCHW", "OIHW", "NCHW"),
        precision=jax.lax.Precision.HIGHEST,
    ) + params["b_conv"][None, :, None, None]
    # out.size(-1) != 1 branch: relu then mean over H, W.
    pooled = jnp.maximum(conv, 0.0).mean(axis=(2, 3))            # (N, Cout)
    return jnp.dot(pooled, params["w_fc"].T,
                   precision=jax.lax.Precision.HIGHEST) + params["b_fc"]


if __name__ == "__main__":
    Cout, Kf, classes = 32, 3, 10
    key = jax.random.PRNGKey(0)
    k_p, k_x1, k_x2, k_x3 = jax.random.split(key, 4)

    Cin = 4
    k_wc, k_bc, k_wf, k_bf = jax.random.split(k_p, 4)
    params = {
        "w_conv": jax.random.normal(k_wc, (Cout, Cin, Kf, Kf), jnp.float32)
        * (1.0 / (Cin * Kf * Kf) ** 0.5),
        "b_conv": jax.random.normal(k_bc, (Cout,), jnp.float32) * 0.1,
        "w_fc": jax.random.normal(k_wf, (classes, Cout), jnp.float32)
        * (1.0 / Cout ** 0.5),
        "b_fc": jax.random.normal(k_bf, (classes,), jnp.float32) * 0.1,
    }

    # 1) Base case: batch=2, 16x16 -> single row tile per sample, batch-parallel.
    x = jax.random.normal(k_x1, (2, Cin, 16, 16), jnp.float32)
    out = jax.block_until_ready(convnet_forward(x, params))
    ref = convnet_reference(x, params)
    assert out.shape == (2, classes)
    # bf16 conv operands / f32 accumulation: slightly wider tolerance than f32.
    assert jnp.allclose(out, ref, atol=2e-2, rtol=2e-2), "base mismatch"

    # 2) Batch-1 path: row tiles split across a second parallel axis (v7x cores).
    x1 = jax.random.normal(k_x2, (1, Cin, 16, 16), jnp.float32)
    out1 = jax.block_until_ready(convnet_forward(x1, params, row_tile_cap=64))
    ref1 = convnet_reference(x1, params)
    assert jnp.allclose(out1, ref1, atol=2e-2, rtol=2e-2), "split mismatch"

    # 3) Ragged spatial size: H*W=100 -> padded+masked last tile.
    x2 = jax.random.normal(k_x3, (2, Cin, 10, 10), jnp.float32)
    out2 = jax.block_until_ready(convnet_forward(x2, params))
    ref2 = convnet_reference(x2, params)
    assert jnp.allclose(out2, ref2, atol=2e-2, rtol=2e-2), "ragged mismatch"

    print("KERNEL_OK")
</pallas_src>

<mosaic_0001>
module attributes {stable_mosaic.version = 11 : i64} {
  func.func @convnet_pool_kernel(%arg0: i32, %arg1: i32, %arg2: i32, %arg3: memref<1x256x36xbf16, #tpu.memory_space<vmem>>, %arg4: memref<36x128xbf16, #tpu.memory_space<vmem>>, %arg5: memref<1x128xf32, #tpu.memory_space<vmem>>, %arg6: memref<1x1x1x128xf32, #tpu.memory_space<vmem>>, %arg7: memref<1x128xf32, #tpu.memory_space<vmem>>) attributes {dimension_semantics = [#tpu.dimension_semantics<parallel>, #tpu.dimension_semantics<parallel>, #tpu.dimension_semantics<arbitrary>], iteration_bounds = array<i64: 2, 1, 1>, scalar_prefetch = 0 : i64, scratch_operands = 1 : i64, tpu.core_type = #tpu.core_type<tc>, window_params = [{transform_indices = @transform_0, window_bounds = array<i64: 1, 256, 36>}, {pipeline_mode = #tpu.pipeline_mode<synchronous>, transform_indices = @transform_1, window_bounds = array<i64: 36, 128>}, {pipeline_mode = #tpu.pipeline_mode<synchronous>, transform_indices = @transform_2, window_bounds = array<i64: 1, 128>}, {transform_indices = @transform_3, window_bounds = array<i64: 1, 1, 1, 128>}]} {
    %c0_i32 = arith.constant 0 : i32
    %0 = arith.cmpi eq, %arg2, %c0_i32 : i32
    %1 = arith.extui %0 : i1 to i32
    %c0_i32_0 = arith.constant 0 : i32
    %2 = arith.cmpi ne, %1, %c0_i32_0 : i32
    scf.if %2 {
      %cst_15 = arith.constant 0.000000e+00 : f32
      %20 = vector.broadcast %cst_15 : f32 to vector<1x128xf32>
      %c0_16 = arith.constant 0 : index
      %c0_17 = arith.constant 0 : index
      %21 = vector.load %arg7[%c0_16, %c0_17] : memref<1x128xf32, #tpu.memory_space<vmem>>, vector<1x128xf32>
      tpu.vector_store %arg7[%c0_16, %c0_17], %20 {strides = array<i32>} : memref<1x128xf32, #tpu.memory_space<vmem>>, vector<1x128xf32>,
    } else {
    }
    %c0 = arith.constant 0 : index
    %c0_1 = arith.constant 0 : index
    %c0_2 = arith.constant 0 : index
    %3 = vector.load %arg3[%c0, %c0_1, %c0_2] : memref<1x256x36xbf16, #tpu.memory_space<vmem>>, vector<1x256x36xbf16>
    %4 = vector.shape_cast %3 : vector<1x256x36xbf16> to vector<256x36xbf16>
    %c0_3 = arith.constant 0 : index
    %c0_4 = arith.constant 0 : index
    %5 = vector.load %arg4[%c0_3, %c0_4] : memref<36x128xbf16, #tpu.memory_space<vmem>>, vector<36x128xbf16>
    %cst = arith.constant dense<0.000000e+00> : vector<256x128xf32>
    %6 = tpu.matmul %4, %5, %cst {dimension_numbers = #tpu.dot_dimension_numbers<[1], [0], [0], [1], [0, 0, 1, 1], [], []>} : vector<256x36xbf16>, vector<36x128xbf16>, vector<256x128xf32> -> vector<256x128xf32>
    %c0_5 = arith.constant 0 : index
    %c0_6 = arith.constant 0 : index
    %7 = vector.load %arg5[%c0_5, %c0_6] : memref<1x128xf32, #tpu.memory_space<vmem>>, vector<1x128xf32>
    %8 = vector.broadcast %7 : vector<1x128xf32> to vector<256x128xf32>
    %9 = arith.addf %6, %8 : vector<256x128xf32>
    %cst_7 = arith.constant 0.000000e+00 : f32
    %10 = vector.broadcast %cst_7 : f32 to vector<256x128xf32>
    %11 = arith.maximumf %9, %10 : vector<256x128xf32>
    %c0_8 = arith.constant 0 : index
    %c0_9 = arith.constant 0 : index
    %12 = vector.load %arg7[%c0_8, %c0_9] : memref<1x128xf32, #tpu.memory_space<vmem>>, vector<1x128xf32>
    %cst_10 = arith.constant dense<0.000000e+00> : vector<128xf32>
    %13 = vector.multi_reduction <add>, %11, %cst_10 [0] : vector<256x128xf32> to vector<128xf32>
    %14 = vector.shape_cast %13 : vector<128xf32> to vector<1x128xf32>
    %15 = arith.addf %12, %14 : vector<1x128xf32>
    %c0_11 = arith.constant 0 : index
    %c0_12 = arith.constant 0 : index
    %16 = vector.load %arg7[%c0_11, %c0_12] : memref<1x128xf32, #tpu.memory_space<vmem>>, vector<1x128xf32>
    tpu.vector_store %arg7[%c0_11, %c0_12], %15 {strides = array<i32>} : memref<1x128xf32, #tpu.memory_space<vmem>>, vector<1x128xf32>,
    %c0_i32_13 = arith.constant 0 : i32
    %17 = arith.cmpi eq, %arg2, %c0_i32_13 : i32
    %18 = arith.extui %17 : i1 to i32
    %c0_i32_14 = arith.constant 0 : i32
    %19 = arith.cmpi ne, %18, %c0_i32_14 : i32
    scf.if %19 {
      %c0_15 = arith.constant 0 : index
      %c0_16 = arith.constant 0 : index
      %20 = vector.load %arg7[%c0_15, %c0_16] : memref<1x128xf32, #tpu.memory_space<vmem>>, vector<1x128xf32>
      %21 = vector.shape_cast %20 : vector<1x128xf32> to vector<1x1x1x128xf32>
      %c0_17 = arith.constant 0 : index
      %c0_18 = arith.constant 0 : index
      %c0_19 = arith.constant 0 : index
      %c0_20 = arith.constant 0 : index
      %22 = vector.load %arg6[%c0_17, %c0_18, %c0_19, %c0_20] : memref<1x1x1x128xf32, #tpu.memory_space<vmem>>, vector<1x1x1x128xf32>
      tpu.vector_store %arg6[%c0_17, %c0_18, %c0_19, %c0_20], %21 {strides = array<i32>} : memref<1x1x1x128xf32, #tpu.memory_space<vmem>>, vector<1x1x1x128xf32>,
    } else {
    }
    return
  }
  func.func @transform_0(%arg0: i32, %arg1: i32, %arg2: i32) -> (i32, i32, i32) {
    %c1_i32 = arith.constant 1 : i32
    %0 = arith.muli %arg1, %c1_i32 : i32
    %1 = arith.addi %0, %arg2 : i32
    %c0_i32 = arith.constant 0 : i32
    %c0_i32_0 = arith.constant 0 : i32
    return %arg0, %1, %c0_i32 : i32, i32, i32
  }
  func.func @transform_1(%arg0: i32, %arg1: i32, %arg2: i32) -> (i32, i32) {
    %c0_i32 = arith.constant 0 : i32
    %c0_i32_0 = arith.constant 0 : i32
    %c0_i32_1 = arith.constant 0 : i32
    return %c0_i32, %c0_i32_0 : i32, i32
  }
  func.func @transform_2(%arg0: i32, %arg1: i32, %arg2: i32) -> (i32, i32) {
    %c0_i32 = arith.constant 0 : i32
    %c0_i32_0 = arith.constant 0 : i32
    %c0_i32_1 = arith.constant 0 : i32
    return %c0_i32, %c0_i32_0 : i32, i32
  }
  func.func @transform_3(%arg0: i32, %arg1: i32, %arg2: i32) -> (i32, i32, i32, i32) {
    %c0_i32 = arith.constant 0 : i32
    %c0_i32_0 = arith.constant 0 : i32
    %c0_i32_1 = arith.constant 0 : i32
    return %arg0, %arg1, %c0_i32, %c0_i32_0 : i32, i32, i32, i32
  }
}

</mosaic_0001>

<llo_original>
// kernel: tpu_custom_call.1
$region0: #{tpu_custom_call.1}
  #allocation0 [shape = 'u32[]', space=smem, size = 0x4, offset = 0x4, fixed_abs, tag = 'smem constant byte address 0x4 - core index']
  #allocation1 [shape = 'u32[144,128]{1,0:T(1,128)}', space=vmem, size = 0x12000, scoped, tag = 'internal scratch']
  #allocation2 [shape = 'f32[1,128]{1,0:T(1,128)}', space=vmem, size = 0x200, scoped, tag = 'scratch operand']
  %s0 = inlined_call_operand.vmem [shape: bf16[2,256,36], index: 0, kind: input, shape index: {}]
  %s1 = inlined_call_operand.vmem [shape: bf16[36,128], index: 1, kind: input, shape index: {}]
  %s2 = inlined_call_operand.vmem [shape: f32[1,128], index: 2, kind: input, shape index: {}]
  %s3 = inlined_call_operand.hbm [shape: f32[2,1,1,128], index: 3, kind: output, shape index: {}]
  %s4 = sld [smem:[#allocation0]]
  $region53: #{tpu_custom_call.1} parent=0
    _
  %s6 = ssub.s32 1, %s4
  %s7 = scalar_select 0, %s6, %s4
  $region1: #{tpu_custom_call.1} parent=0
    #allocation3 [shape = 'u8[1024]{0}', space=vmem, size = 0x400, scoped, tag = 'output window, operand 0']
    #allocation4 [shape = 's32[2]{0}', space=sflag, size = 0x8, scoped, tag = 'scoped memory for tpu_custom_call.1']
    %8 = vsyncpa [#allocation4], 0
    %s9 = scalar_lea.sflag [#allocation4], 1
    %10 = vsyncpa %s9, 0
    loop: start=0, step=1, limit=4
    $region2: #{tpu_custom_call.1} parent=1 // loop_pre_header
      _
    $region3: #{tpu_custom_call.1} parent=1 // loop_header
      %s12 = sphi 0, %s16
      %p13 = scmp.ge.s32.totalorder %s12, 4
      %s19 = sphi 0, %s38
      %s20 = sphi 0, %s34
      %s21 = sphi 0, %s30
      %s22 = sphi 0, %s19
      %s23 = sphi 0, %s20
      %s24 = sphi 0, %s21
      %s25 = sphi 0, %s22
      %s26 = sphi 0, %s23
      %s27 = sphi 0, %s24
      %s45 = sphi 0, %s47
      %s48 = sphi 0, %s45
      %s49 = sphi 0, %s48
      %s65 = sphi 0, %s49
      %s69 = sphi 0, %s69
      %s71 = sphi 0, %s69
      %s72 = sphi 0, %s71
      %s86 = sphi 0, %s72
      %s90 = sphi 0, %s90
      %s92 = sphi 0, %s90
      %s93 = sphi 0, %s92
      %s107 = sphi 0, %s93
      %s115 = sphi 0, %s117
      %s118 = sphi 0, %s115
      %s119 = sphi 0, %s118
      %s135 = sphi 0, %s119
    $region4: #{tpu_custom_call.1} parent=1 // loop_header_branch
      %15 = sbr.rel (%p13) target = $region8
    $region5: #{tpu_custom_call.1} parent=1 // loop_body
      %s17 = ssub.s32 %s12, 1
      %s18 = ssub.s32 %s12, 2
      %s28 = sadd.s32 1, %s21
      %p29 = scmp.ge.s32.totalorder %s28, 1
      %s30 = scalar_select %p29, 0, %s28
      %s31 = sadd.s32 1, %s20
      %s32 = scalar_select %p29, %s31, %s20
      %p33 = scmp.ge.s32.totalorder %s32, 1
      %s34 = scalar_select %p33, 0, %s32
      %s35 = sadd.s32 1, %s19
      %s36 = scalar_select %p33, %s35, %s19
      %p37 = scmp.ge.s32.totalorder %s36, 2
      %s38 = scalar_select %p37, 0, %s36
      %s39 = sadd.s32 %s20, %s21
      %s40 = sadd.s32 %s34, %s30
      %s41 = ssub.s32 %s19, %s38
      %s42 = ssub.s32 %s39, %s40
      %s43 = sor.u32 %s41, %s42
      %p44 = scmp.eq.s32.totalorder %s43, 0
      %s46 = sadd.s32 %s45, 1
      %s47 = scalar_select %p44, %s45, %s46
      %p50 = pneg %p44
      %p51 = scmp.eq.s32.totalorder %s12, 1
      %p52 = por %p50, %p51
      %p53 = scmp.ne.s32.totalorder %s45, %s48
      %p54 = scmp.eq.s32.totalorder %s12, 0
      %p55 = por %p53, %p54
      %p56 = scmp.ne.s32.totalorder %s45, %s48
      %p57 = scmp.eq.s32.totalorder %s17, 1
      %p58 = por %p56, %p57
      %p59 = scmp.ne.s32.totalorder %s48, %s49
      %p60 = scmp.eq.s32.totalorder %s17, 0
      %p61 = por %p59, %p60
      %p62 = scmp.ne.s32.totalorder %s48, %s49
      %p63 = scmp.eq.s32.totalorder %s18, 1
      %p64 = por %p62, %p63
      %p66 = scmp.ne.s32.totalorder %s49, %s65
      %p67 = scmp.eq.s32.totalorder %s18, 0
      %p68 = por %p66, %p67
      %s70 = sadd.s32 %s69, 1
      %p73 = scmp.eq.s32.totalorder %s12, 1
      %p74 = scmp.ne.s32.totalorder %s69, %s71
      %p75 = scmp.eq.s32.totalorder %s12, 0
      %p76 = por %p74, %p75
      %p77 = scmp.ne.s32.totalorder %s69, %s71
      %p78 = scmp.eq.s32.totalorder %s17, 1
      %p79 = por %p77, %p78
      %p80 = scmp.ne.s32.totalorder %s71, %s72
      %p81 = scmp.eq.s32.totalorder %s17, 0
      %p82 = por %p80, %p81
      %p83 = scmp.ne.s32.totalorder %s71, %s72
      %p84 = scmp.eq.s32.totalorder %s18, 1
      %p85 = por %p83, %p84
      %p87 = scmp.ne.s32.totalorder %s72, %s86
      %p88 = scmp.eq.s32.totalorder %s18, 0
      %p89 = por %p87, %p88
      %s91 = sadd.s32 %s90, 1
      %p94 = scmp.eq.s32.totalorder %s12, 1
      %p95 = scmp.ne.s32.totalorder %s90, %s92
      %p96 = scmp.eq.s32.totalorder %s12, 0
      %p97 = por %p95, %p96
      %p98 = scmp.ne.s32.totalorder %s90, %s92
      %p99 = scmp.eq.s32.totalorder %s17, 1
      %p100 = por %p98, %p99
      %p101 = scmp.ne.s32.totalorder %s92, %s93
      %p102 = scmp.eq.s32.totalorder %s17, 0
      %p103 = por %p101, %p102
      %p104 = scmp.ne.s32.totalorder %s92, %s93
      %p105 = scmp.eq.s32.totalorder %s18, 1
      %p106 = por %p104, %p105
      %p108 = scmp.ne.s32.totalorder %s93, %s107
      %p109 = scmp.eq.s32.totalorder %s18, 0
      %p110 = por %p108, %p109
      %s111 = ssub.s32 %s19, %s38
      %s112 = ssub.s32 %s20, %s34
      %s113 = sor.u32 %s111, %s112
      %p114 = scmp.eq.s32.totalorder %s113, 0
      %s116 = sadd.s32 %s115, 1
      %s117 = scalar_select %p114, %s115, %s116
      %p120 = pneg %p114
      %p121 = scmp.eq.s32.totalorder %s12, 1
      %p122 = por %p120, %p121
      %p123 = scmp.ne.s32.totalorder %s115, %s118
      %p124 = scmp.eq.s32.totalorder %s12, 0
      %p125 = por %p123, %p124
      %p126 = scmp.ne.s32.totalorder %s115, %s118
      %p127 = scmp.eq.s32.totalorder %s17, 1
      %p128 = por %p126, %p127
      %p129 = scmp.ne.s32.totalorder %s118, %s119
      %p130 = scmp.eq.s32.totalorder %s17, 0
      %p131 = por %p129, %p130
      %p132 = scmp.ne.s32.totalorder %s118, %s119
      %p133 = scmp.eq.s32.totalorder %s18, 1
      %p134 = por %p132, %p133
      %p136 = scmp.ne.s32.totalorder %s119, %s135
      %p137 = scmp.eq.s32.totalorder %s18, 0
      %p138 = por %p136, %p137
      %p139 = scmp.le.s32.totalorder 1, %s12
      %p140 = scmp.lt.s32.totalorder %s12, 3
      %p141 = pnand %p139, %p140
      %p142 = pneg %p141
      // Predicated region
      $region9: #{tpu_custom_call.1} parent=5 // pred_check
        _
      $region10: #{tpu_custom_call.1} parent=5 // pred_check_branch
        %144 = sbr.rel (%p141) target = $region12
      $region11: #{tpu_custom_call.1} parent=5 // pred_region
        %s145 = ssub.s32 %s12, 1
        // Predicated region
        $region13: #{tpu_custom_call.1} parent=11 // pred_check
          %p146 = pneg %p82
        $region14: #{tpu_custom_call.1} parent=11 // pred_check_branch
          %148 = sbr.rel (%p146) target = $region16
        $region15: #{tpu_custom_call.1} parent=11 // pred_region
          _
        $region16: #{tpu_custom_call.1} parent=11 // pred_fallthru
          _
        // Predicated region
        $region17: #{tpu_custom_call.1} parent=11 // pred_check
          %p149 = pneg %p103
        $region18: #{tpu_custom_call.1} parent=11 // pred_check_branch
          %151 = sbr.rel (%p149) target = $region20
        $region19: #{tpu_custom_call.1} parent=11 // pred_region
          _
        $region20: #{tpu_custom_call.1} parent=11 // pred_fallthru
          _
      $region12: #{tpu_custom_call.1} parent=5 // pred_fallthru
        _
      %p152 = scmp.lt.s32.totalorder %s12, 2
      // Predicated region
      $region21: #{tpu_custom_call.1} parent=5 // pred_check
        %p153 = pneg %p152
      $region22: #{tpu_custom_call.1} parent=5 // pred_check_branch
        %155 = sbr.rel (%p153) target = $region24
      $region23: #{tpu_custom_call.1} parent=5 // pred_region
        // Predicated region
        $region25: #{tpu_custom_call.1} parent=23 // pred_check
          %p156 = pneg %p55
        $region26: #{tpu_custom_call.1} parent=23 // pred_check_branch
          %158 = sbr.rel (%p156) target = $region28
        $region27: #{tpu_custom_call.1} parent=23 // pred_region
          %s159 = sadd.s32 %s20, %s21
          %s160 = smul.u32 32, %s159
          %p161 = scmp.lt.s32.totalorder %s19, 1
          %s162 = scalar_select %p161, %s19, 1
          %p163 = scmp.lt.s32.totalorder %s160, 31
          %s164 = scalar_select %p163, %s160, 31
          %s165 = smul.addr %s162, 32
          %s166 = sadd.s32 %s164, %s165
          %s167 = smul.addr %s166, 4
          %s168 = scalar_lea.vmem %s0, %s167
          %s169 = sadd.s32 %s20, %s21
          %s170 = smul.u32 32, %s169
        $region28: #{tpu_custom_call.1} parent=23 // pred_fallthru
          _
      $region24: #{tpu_custom_call.1} parent=5 // pred_fallthru
        _
      %p171 = scmp.le.s32.totalorder 1, %s12
      %p172 = scmp.lt.s32.totalorder %s12, 3
      %p173 = pnand %p171, %p172
      %p174 = pneg %p173
      // Predicated region
      $region29: #{tpu_custom_call.1} parent=5 // pred_check
        _
      $region30: #{tpu_custom_call.1} parent=5 // pred_check_branch
        %176 = sbr.rel (%p173) target = $region32
      $region31: #{tpu_custom_call.1} parent=5 // pred_region
        %s177 = ssub.s32 %s12, 1
        %s178 = sadd.s32 %s23, %s24
        %s179 = smul.u32 32, %s178
        %p180 = scmp.lt.s32.totalorder %s22, 1
        %s181 = scalar_select %p180, %s22, 1
        %p182 = scmp.lt.s32.totalorder %s179, 31
        %s183 = scalar_select %p182, %s179, 31
        %s184 = smul.addr %s181, 32
        %s185 = sadd.s32 %s183, %s184
        %s186 = smul.addr %s185, 4
        %s187 = scalar_lea.vmem %s0, %s186
        %p188 = pneg %p61
        %p189 = pneg %p58
        %p190 = pneg %p82
        %p191 = pneg %p79
        %p192 = pneg %p103
        %p193 = pneg %p100
        %p194 = pneg %p131
        %p195 = pneg %p128
        %s196 = sand.u32 %s118, 1
        %s197 = scalar_lea.sflag [#allocation4], %s196
        %s198 = sand.u32 %s118, 1
        %s199 = scalar_lea.vmem [#allocation3], %s198
        %s200 = sadd.s32 %s23, %s24
        %s201 = smul.u32 32, %s200
        %p202 = scmp.lt.s32.totalorder %s22, 1
        %s203 = scalar_select %p202, %s22, 1
        %p204 = scmp.lt.s32.totalorder %s201, 31
        %s205 = scalar_select %p204, %s201, 31
        %s206 = smul.addr %s203, 32
        %s207 = sadd.s32 %s205, %s206
        %s208 = smul.addr %s207, 4
        %s209 = scalar_lea.vmem %s0, %s208
        %s210 = sadd.s32 %s23, %s24
        %s211 = smul.u32 32, %s210
        %p213 = scmp.eq.s32.totalorder %s24, 0
        // Predicated region
        $region33: #{tpu_custom_call.1} parent=31 // pred_check
          %p214 = pneg %p213
        $region34: #{tpu_custom_call.1} parent=31 // pred_check_branch
          %216 = sbr.rel (%p214) target = $region36
        $region35: #{tpu_custom_call.1} parent=31 // pred_region
          %217 = vst [vmem:[#allocation2] sm:$0x1] 0.0
        $region36: #{tpu_custom_call.1} parent=31 // pred_fallthru
          _
        %v218 = vld [vmem:[%s209] sm:$0xf]
        %v219 = vld [vmem:[%s209 + $0x4] sm:$0xf]
        %v220 = vld [vmem:[%s209 + $0x8] sm:$0xf]
        %v221 = vld [vmem:[%s209 + $0xc] sm:$0xf]
        %v222 = vld [vmem:[%s209 + $0x10] sm:$0xf]
        %v223 = vld [vmem:[%s209 + $0x14] sm:$0xf]
        %v224 = vld [vmem:[%s209 + $0x18] sm:$0xf]
        %v225 = vld [vmem:[%s209 + $0x1c] sm:$0xf]
        %v226 = vld [vmem:[%s209 + $0x20] sm:$0xf]
        %v227 = vld [vmem:[%s209 + $0x24] sm:$0xf]
        %v228 = vld [vmem:[%s209 + $0x28] sm:$0xf]
        %v229 = vld [vmem:[%s209 + $0x2c] sm:$0xf]
        %v230 = vld [vmem:[%s209 + $0x30] sm:$0xf]
        %v231 = vld [vmem:[%s209 + $0x34] sm:$0xf]
        %v232 = vld [vmem:[%s209 + $0x38] sm:$0xf]
        %v233 = vld [vmem:[%s209 + $0x3c] sm:$0xf]
        %v234 = vld [vmem:[%s209 + $0x40] sm:$0xf]
        %v235 = vld [vmem:[%s209 + $0x44] sm:$0xf]
        %v236 = vld [vmem:[%s209 + $0x48] sm:$0xf]
        %v237 = vld [vmem:[%s209 + $0x4c] sm:$0xf]
        %v238 = vld [vmem:[%s209 + $0x50] sm:$0xf]
        %v239 = vld [vmem:[%s209 + $0x54] sm:$0xf]
        %v240 = vld [vmem:[%s209 + $0x58] sm:$0xf]
        %v241 = vld [vmem:[%s209 + $0x5c] sm:$0xf]
        %v242 = vld [vmem:[%s209 + $0x60] sm:$0xf]
        %v243 = vld [vmem:[%s209 + $0x64] sm:$0xf]
        %v244 = vld [vmem:[%s209 + $0x68] sm:$0xf]
        %v245 = vld [vmem:[%s209 + $0x6c] sm:$0xf]
        %v246 = vld [vmem:[%s209 + $0x70] sm:$0xf]
        %v247 = vld [vmem:[%s209 + $0x74] sm:$0xf]
        %v248 = vld [vmem:[%s209 + $0x78] sm:$0xf]
        %v249 = vld [vmem:[%s209 + $0x7c] sm:$0xf]
        %v250 = vld [vmem:[%s1] sm:$0xf]
        %v251 = vld [vmem:[%s1 + $0x4] sm:$0xf]
        %v252 = vld [vmem:[%s1 + $0x8] sm:$0xf]
        %v253 = vld [vmem:[%s1 + $0xc] sm:$0xf]
        %v254 = vld [vmem:[%s1 + $0x10] sm:$0x3]
        %v255 = vld [vmem:[%s2] sm:$0x1]
        %v257 = vlaneseq
        %v258 = vshrl.u32 %v257, 7
        %v259 = vsub.s32 0, %v258
        %v260 = vrot.slane %v255, %v259
        %v294 = vunpack.c.l.b16 %v218
        %v295 = vunpack.c.l.b16 %v219
        %v296 = vunpack.c.l.b16 %v220
        %v297 = vunpack.c.l.b16 %v221
        %v298 = vunpack.c.l.b16 %v222
        %v299 = vunpack.c.l.b16 %v223
        %v300 = vunpack.c.l.b16 %v224
        %v301 = vunpack.c.l.b16 %v225
        %v302 = vunpack.c.l.b16 %v226
        %v303 = vunpack.c.l.b16 %v227
        %v304 = vunpack.c.l.b16 %v228
        %v305 = vunpack.c.l.b16 %v229
        %v306 = vunpack.c.l.b16 %v230
        %v307 = vunpack.c.l.b16 %v231
        %v308 = vunpack.c.l.b16 %v232
        %v309 = vunpack.c.l.b16 %v233
        %v310 = vunpack.c.l.b16 %v234
        %v311 = vunpack.c.l.b16 %v235
        %v312 = vunpack.c.l.b16 %v236
        %v313 = vunpack.c.l.b16 %v237
        %v314 = vunpack.c.l.b16 %v238
        %v315 = vunpack.c.l.b16 %v239
        %v316 = vunpack.c.l.b16 %v240
        %v317 = vunpack.c.l.b16 %v241
        %v318 = vunpack.c.l.b16 %v242
        %v319 = vunpack.c.l.b16 %v243
        %v320 = vunpack.c.l.b16 %v244
        %v321 = vunpack.c.l.b16 %v245
        %v322 = vunpack.c.l.b16 %v246
        %v323 = vunpack.c.l.b16 %v247
        %v324 = vunpack.c.l.b16 %v248
        %v325 = vunpack.c.l.b16 %v249
        %v326 = vpack.c.b16 %v295, %v294
        %v327 = vpack.c.b16 %v297, %v296
        %v328 = vpack.c.b16 %v299, %v298
        %v329 = vpack.c.b16 %v301, %v300
        %v330 = vpack.c.b16 %v303, %v302
        %v331 = vpack.c.b16 %v305, %v304
        %v332 = vpack.c.b16 %v307, %v306
        %v333 = vpack.c.b16 %v309, %v308
        %v334 = vpack.c.b16 %v311, %v310
        %v335 = vpack.c.b16 %v313, %v312
        %v336 = vpack.c.b16 %v315, %v314
        %v337 = vpack.c.b16 %v317, %v316
        %v338 = vpack.c.b16 %v319, %v318
        %v339 = vpack.c.b16 %v321, %v320
        %v340 = vpack.c.b16 %v323, %v322
        %v341 = vpack.c.b16 %v325, %v324
        %v347 = vunpack.c.l.b16 %v250
        %v348 = vunpack.c.l.b16 %v251
        %v349 = vunpack.c.l.b16 %v252
        %v350 = vunpack.c.l.b16 %v253
        %v351 = vunpack.c.l.b16 %v254
        %v352 = vpack.c.b16 %v348, %v347
        %v353 = vpack.c.b16 %v350, %v349
        %v354 = vpack.c.b16 %v351, %v351
        %vm357 = vcmask 293888
        %v359 = vsel %vm357, %v326, 0
        %v362 = vsel %vm357, %v327, 0
        %v365 = vsel %vm357, %v328, 0
        %v368 = vsel %vm357, %v329, 0
        %v371 = vsel %vm357, %v330, 0
        %v374 = vsel %vm357, %v331, 0
        %v377 = vsel %vm357, %v332, 0
        %v380 = vsel %vm357, %v333, 0
        %v383 = vsel %vm357, %v334, 0
        %v386 = vsel %vm357, %v335, 0
        %v389 = vsel %vm357, %v336, 0
        %v392 = vsel %vm357, %v337, 0
        %v395 = vsel %vm357, %v338, 0
        %v398 = vsel %vm357, %v339, 0
        %v401 = vsel %vm357, %v340, 0
        %v404 = vsel %vm357, %v341, 0
        %vm406 = vcmask 1041408
        %v408 = vsel %vm406, %v354, 0
        %410 = vmatprep.subr.bf16.mxu0 0
        %411 = vmatpush1.bf16.msra.mxu0 %v352
        %412 = vmatprep.subr.bf16.mxu0 0
        %413 = vmatpush1.bf16.msra.mxu0 %v353
        %414 = vmatprep.subr.bf16.mxu0 0
        %415 = vmatpush1.bf16.msra.mxu0 %v408
        %416 = vmatprep.subr.bf16.mxu0 0
        %417 = vmatpush1.bf16.msra.mxu0 0
        %418 = vmatprep.subr.bf16.mxu0 0
        %419 = vmatpush1.bf16.msra.mxu0 0
        %420 = vmatprep.subr.bf16.mxu0 0
        %421 = vmatpush1.bf16.msra.mxu0 0
        %422 = vmatprep.subr.bf16.mxu0 0
        %423 = vmatpush1.bf16.msra.mxu0 0
        %424 = vmatprep.subr.bf16.mxu0 0
        %425 = vmatpush1.bf16.msra.mxu0 0
        %426 = vmatprep.subr.bf16.mxu0 0
        %427 = vmatpush1.bf16.msra.mxu0 0
        %428 = vmatprep.subr.bf16.mxu0 0
        %429 = vmatpush1.bf16.msra.mxu0 0
        %430 = vmatprep.subr.bf16.mxu0 0
        %431 = vmatpush1.bf16.msra.mxu0 0
        %432 = vmatprep.subr.bf16.mxu0 0
        %433 = vmatpush1.bf16.msra.mxu0 0
        %434 = vmatprep.subr.bf16.mxu0 0
        %435 = vmatpush1.bf16.msra.mxu0 0
        %436 = vmatprep.subr.bf16.mxu0 0
        %437 = vmatpush1.bf16.msra.mxu0 0
        %438 = vmatprep.subr.bf16.mxu0 0
        %439 = vmatpush1.bf16.msra.mxu0 0
        %440 = vmatprep.subr.bf16.mxu0 0
        %441 = vmatpush1.bf16.msra.mxu0 0
        %442 = vmatprep.mubr.bf16.mxu0 0
        %443 = vmatmul.mubr.bf16.gmra.mrb[0].mxu0 %v359
        %v444 = vpop.f32.mrb[0].mxu0
        %v445 = vadd.f32 %v260, %v444
        %v446 = vpop.f32.mrb[0].mxu0
        %v447 = vpop.f32.mrb[0].mxu0
        %v448 = vadd.f32 %v260, %v447
        %v449 = vpop.f32.mrb[0].mxu0
        %450 = vmatprep.mubr.bf16.mxu0 0
        %451 = vmatmul.mubr.bf16.gmra.mrb[0].mxu0 %v362
        %v452 = vpop.f32.mrb[0].mxu0
        %v453 = vadd.f32 %v260, %v452
        %v454 = vpop.f32.mrb[0].mxu0
        %v455 = vpop.f32.mrb[0].mxu0
        %v456 = vadd.f32 %v260, %v455
        %v457 = vpop.f32.mrb[0].mxu0
        %458 = vmatprep.mubr.bf16.mxu0 0
        %459 = vmatmul.mubr.bf16.gmra.mrb[0].mxu0 %v365
        %v460 = vpop.f32.mrb[0].mxu0
        %v461 = vadd.f32 %v260, %v460
        %v462 = vpop.f32.mrb[0].mxu0
        %v463 = vpop.f32.mrb[0].mxu0
        %v464 = vadd.f32 %v260, %v463
        %v465 = vpop.f32.mrb[0].mxu0
        %466 = vmatprep.mubr.bf16.mxu0 0
        %467 = vmatmul.mubr.bf16.gmra.mrb[0].mxu0 %v368
        %v468 = vpop.f32.mrb[0].mxu0
        %v469 = vadd.f32 %v260, %v468
        %v470 = vpop.f32.mrb[0].mxu0
        %v471 = vpop.f32.mrb[0].mxu0
        %v472 = vadd.f32 %v260, %v471
        %v473 = vpop.f32.mrb[0].mxu0
        %474 = vmatprep.mubr.bf16.mxu0 0
        %475 = vmatmul.mubr.bf16.gmra.mrb[0].mxu0 %v371
        %v476 = vpop.f32.mrb[0].mxu0
        %v477 = vadd.f32 %v260, %v476
        %v478 = vpop.f32.mrb[0].mxu0
        %v479 = vpop.f32.mrb[0].mxu0
        %v480 = vadd.f32 %v260, %v479
        %v481 = vpop.f32.mrb[0].mxu0
        %482 = vmatprep.mubr.bf16.mxu0 0
        %483 = vmatmul.mubr.bf16.gmra.mrb[0].mxu0 %v374
        %v484 = vpop.f32.mrb[0].mxu0
        %v485 = vadd.f32 %v260, %v484
        %v486 = vpop.f32.mrb[0].mxu0
        %v487 = vpop.f32.mrb[0].mxu0
        %v488 = vadd.f32 %v260, %v487
        %v489 = vpop.f32.mrb[0].mxu0
        %490 = vmatprep.mubr.bf16.mxu0 0
        %491 = vmatmul.mubr.bf16.gmra.mrb[0].mxu0 %v377
        %v492 = vpop.f32.mrb[0].mxu0
        %v493 = vadd.f32 %v260, %v492
        %v494 = vpop.f32.mrb[0].mxu0
        %v495 = vpop.f32.mrb[0].mxu0
        %v496 = vadd.f32 %v260, %v495
        %v497 = vpop.f32.mrb[0].mxu0
        %498 = vmatprep.mubr.bf16.mxu0 0
        %499 = vmatmul.mubr.bf16.gmra.mrb[0].mxu0 %v380
        %v500 = vpop.f32.mrb[0].mxu0
        %v501 = vadd.f32 %v260, %v500
        %v502 = vpop.f32.mrb[0].mxu0
        %v503 = vpop.f32.mrb[0].mxu0
        %v504 = vadd.f32 %v260, %v503
        %v505 = vpop.f32.mrb[0].mxu0
        %506 = vmatprep.mubr.bf16.mxu0 0
        %507 = vmatmul.mubr.bf16.gmra.mrb[0].mxu0 %v383
        %v508 = vpop.f32.mrb[0].mxu0
        %v509 = vadd.f32 %v260, %v508
        %v510 = vpop.f32.mrb[0].mxu0
        %v511 = vpop.f32.mrb[0].mxu0
        %v512 = vadd.f32 %v260, %v511
        %v513 = vpop.f32.mrb[0].mxu0
        %514 = vmatprep.mubr.bf16.mxu0 0
        %515 = vmatmul.mubr.bf16.gmra.mrb[0].mxu0 %v386
        %v516 = vpop.f32.mrb[0].mxu0
        %v517 = vadd.f32 %v260, %v516
        %v518 = vpop.f32.mrb[0].mxu0
        %v519 = vpop.f32.mrb[0].mxu0
        %v520 = vadd.f32 %v260, %v519
        %v521 = vpop.f32.mrb[0].mxu0
        %522 = vmatprep.mubr.bf16.mxu0 0
        %523 = vmatmul.mubr.bf16.gmra.mrb[0].mxu0 %v389
        %v524 = vpop.f32.mrb[0].mxu0
        %v525 = vadd.f32 %v260, %v524
        %v526 = vpop.f32.mrb[0].mxu0
        %v527 = vpop.f32.mrb[0].mxu0
        %v528 = vadd.f32 %v260, %v527
        %v529 = vpop.f32.mrb[0].mxu0
        %530 = vmatprep.mubr.bf16.mxu0 0
        %531 = vmatmul.mubr.bf16.gmra.mrb[0].mxu0 %v392
        %v532 = vpop.f32.mrb[0].mxu0
        %v533 = vadd.f32 %v260, %v532
        %v534 = vpop.f32.mrb[0].mxu0
        %v535 = vpop.f32.mrb[0].mxu0
        %v536 = vadd.f32 %v260, %v535
        %v537 = vpop.f32.mrb[0].mxu0
        %538 = vmatprep.mubr.bf16.mxu0 0
        %539 = vmatmul.mubr.bf16.gmra.mrb[0].mxu0 %v395
        %v540 = vpop.f32.mrb[0].mxu0
        %v541 = vadd.f32 %v260, %v540
        %v542 = vpop.f32.mrb[0].mxu0
        %v543 = vpop.f32.mrb[0].mxu0
        %v544 = vadd.f32 %v260, %v543
        %v545 = vpop.f32.mrb[0].mxu0
        %546 = vmatprep.mubr.bf16.mxu0 0
        %547 = vmatmul.mubr.bf16.gmra.mrb[0].mxu0 %v398
        %v548 = vpop.f32.mrb[0].mxu0
        %v549 = vadd.f32 %v260, %v548
        %v550 = vpop.f32.mrb[0].mxu0
        %v551 = vpop.f32.mrb[0].mxu0
        %v552 = vadd.f32 %v260, %v551
        %v553 = vpop.f32.mrb[0].mxu0
        %554 = vmatprep.mubr.bf16.mxu0 0
        %555 = vmatmul.mubr.bf16.gmra.mrb[0].mxu0 %v401
        %v556 = vpop.f32.mrb[0].mxu0
        %v557 = vadd.f32 %v260, %v556
        %v558 = vpop.f32.mrb[0].mxu0
        %v559 = vpop.f32.mrb[0].mxu0
        %v560 = vadd.f32 %v260, %v559
        %v561 = vpop.f32.mrb[0].mxu0
        %562 = vmatprep.mubr.bf16.mxu0 0
        %563 = vmatmul.mubr.bf16.gmra.mrb[0].mxu0 %v404
        %v564 = vpop.f32.mrb[0].mxu0
        %v565 = vadd.f32 %v260, %v564
        %v566 = vpop.f32.mrb[0].mxu0
        %v567 = vpop.f32.mrb[0].mxu0
        %v568 = vadd.f32 %v260, %v567
        %v569 = vpop.f32.mrb[0].mxu0
        %570 = vdwg.mxu0
        %v571 = vmax.f32 %v445, 0.0
        %v572 = vmax.f32 %v448, 0.0
        %v573 = vmax.f32 %v453, 0.0
        %v574 = vmax.f32 %v456, 0.0
        %v575 = vmax.f32 %v461, 0.0
        %v576 = vmax.f32 %v464, 0.0
        %v577 = vmax.f32 %v469, 0.0
        %v578 = vmax.f32 %v472, 0.0
        %v579 = vmax.f32 %v477, 0.0
        %v580 = vmax.f32 %v480, 0.0
        %v581 = vmax.f32 %v485, 0.0
        %v582 = vmax.f32 %v488, 0.0
        %v583 = vmax.f32 %v493, 0.0
        %v584 = vmax.f32 %v496, 0.0
        %v585 = vmax.f32 %v501, 0.0
        %v586 = vmax.f32 %v504, 0.0
        %v587 = vmax.f32 %v509, 0.0
        %v588 = vmax.f32 %v512, 0.0
        %v589 = vmax.f32 %v517, 0.0
        %v590 = vmax.f32 %v520, 0.0
        %v591 = vmax.f32 %v525, 0.0
        %v592 = vmax.f32 %v528, 0.0
        %v593 = vmax.f32 %v533, 0.0
        %v594 = vmax.f32 %v536, 0.0
        %v595 = vmax.f32 %v541, 0.0
        %v596 = vmax.f32 %v544, 0.0
        %v597 = vmax.f32 %v549, 0.0
        %v598 = vmax.f32 %v552, 0.0
        %v599 = vmax.f32 %v557, 0.0
        %v600 = vmax.f32 %v560, 0.0
        %v601 = vmax.f32 %v565, 0.0
        %v602 = vmax.f32 %v568, 0.0
        %v603 = vld [vmem:[#allocation2] sm:$0x1]
        %v604 = vadd.f32 %v571, %v572
        %v605 = vadd.f32 %v604, %v573
        %v606 = vadd.f32 %v605, %v574
        %v607 = vadd.f32 %v606, %v575
        %v608 = vadd.f32 %v607, %v576
        %v609 = vadd.f32 %v608, %v577
        %v610 = vadd.f32 %v609, %v578
        %v611 = vadd.f32 %v610, %v579
        %v612 = vadd.f32 %v611, %v580
        %v613 = vadd.f32 %v612, %v581
        %v614 = vadd.f32 %v613, %v582
        %v615 = vadd.f32 %v614, %v583
        %v616 = vadd.f32 %v615, %v584
        %v617 = vadd.f32 %v616, %v585
        %v618 = vadd.f32 %v617, %v586
        %v619 = vadd.f32 %v618, %v587
        %v620 = vadd.f32 %v619, %v588
        %v621 = vadd.f32 %v620, %v589
        %v622 = vadd.f32 %v621, %v590
        %v623 = vadd.f32 %v622, %v591
        %v624 = vadd.f32 %v623, %v592
        %v625 = vadd.f32 %v624, %v593
        %v626 = vadd.f32 %v625, %v594
        %v627 = vadd.f32 %v626, %v595
        %v628 = vadd.f32 %v627, %v596
        %v629 = vadd.f32 %v628, %v597
        %v630 = vadd.f32 %v629, %v598
        %v631 = vadd.f32 %v630, %v599
        %v632 = vadd.f32 %v631, %v600
        %v633 = vadd.f32 %v632, %v601
        %v634 = vadd.f32 %v633, %v602
        %v635 = vrot.slane %v634, 4
        %v636 = vadd.f32 %v634, %v635
        %v637 = vrot.slane %v636, 2
        %v638 = vadd.f32 %v636, %v637
        %v639 = vrot.slane %v638, 1
        %v640 = vadd.f32 %v638, %v639
        %v641 = vadd.f32 %v603, %v640
        %642 = vst [vmem:[#allocation2] sm:$0x1] %v641
        // Predicated region
        $region37: #{tpu_custom_call.1} parent=31 // pred_check
          %p643 = pneg %p213
        $region38: #{tpu_custom_call.1} parent=31 // pred_check_branch
          %645 = sbr.rel (%p643) target = $region40
        $region39: #{tpu_custom_call.1} parent=31 // pred_region
          %v646 = vld [vmem:[#allocation2] sm:$0x1]
          %647 = vst [vmem:[%s199] sm:$0x1] %v646
        $region40: #{tpu_custom_call.1} parent=31 // pred_fallthru
          _
        %s648 = sand.u32 %s118, 1
        %s649 = scalar_lea.sflag [#allocation4], %s648
        %s650 = sand.u32 %s118, 1
        %s651 = scalar_lea.vmem [#allocation3], %s650
        // Predicated region
        $region41: #{tpu_custom_call.1} parent=31 // pred_check
          %p652 = pneg %p128
        $region42: #{tpu_custom_call.1} parent=31 // pred_check_branch
          %654 = sbr.rel (%p652) target = $region44
        $region43: #{tpu_custom_call.1} parent=31 // pred_region
          %s656 = ssub.s32 16, 16
          %657 = vsyncadd %s649, %s656
          %s658 = sadd.s32 %s23, %s22
          %s659 = smul.addr %s658, 16
          %s660 = scalar_lea.hbm %s3, %s659
          %s662 = sshll.u32 %s651, 4
          %s663 = int_to_ptr.vmem [resolvable:$true] %s662
          %665 = dma.vmem_to_hbm [thread:$0]  %s663, 16, %s660, %s649
        $region44: #{tpu_custom_call.1} parent=31 // pred_fallthru
          _
      $region32: #{tpu_custom_call.1} parent=5 // pred_fallthru
        _
      %p666 = scmp.le.s32.totalorder 2, %s12
      // Predicated region
      $region45: #{tpu_custom_call.1} parent=5 // pred_check
        %p667 = pneg %p666
      $region46: #{tpu_custom_call.1} parent=5 // pred_check_branch
        %669 = sbr.rel (%p667) target = $region48
      $region47: #{tpu_custom_call.1} parent=5 // pred_region
        %s670 = ssub.s32 %s12, 2
        // Predicated region
        $region49: #{tpu_custom_call.1} parent=47 // pred_check
          %p671 = pneg %p134
        $region50: #{tpu_custom_call.1} parent=47 // pred_check_branch
          %673 = sbr.rel (%p671) target = $region52
        $region51: #{tpu_custom_call.1} parent=47 // pred_region
          %s674 = sand.u32 %s119, 1
          %s675 = scalar_lea.sflag [#allocation4], %s674
          %s676 = sand.u32 %s119, 1
          %s677 = scalar_lea.vmem [#allocation3], %s676
          %678 = dma.done %s675, 16
        $region52: #{tpu_custom_call.1} parent=47 // pred_fallthru
          _
      $region48: #{tpu_custom_call.1} parent=5 // pred_fallthru
        _
    $region6: #{tpu_custom_call.1} parent=1 // loop_footer
      %s16 = sadd.s32 1, %s12
    $region7: #{tpu_custom_call.1} parent=1 // loop_footer_branch
      %11 = sbr.rel target = $region3
    $region8: #{tpu_custom_call.1} parent=1 // loop_exit
      _
    %679 = vsyncpa [#allocation4], 1
    %s680 = scalar_lea.sflag [#allocation4], 1
    %681 = vsyncpa %s680, 1

</llo_original>
